<compile_context>
chip_gen: v5e
topology: v5e:2x2
jax: 0.10.0
libtpu: 0.0.40
codegen_flags: <defaults>
</compile_context>

<pallas_src>
import jax
import jax.numpy as jnp
from jax.experimental import pallas as pl
from jax.experimental.pallas import tpu as pltpu

# ----------------------------- model config ---------------------------------
DEPTH = 3
INPUT_SIZE = 16
HIDDEN = 32
CLASSES = 10
DROPOUT = 0.5          # identity at inference
BATCH = 16

# ----------------------- packed parameter layout -----------------------------
# One f32 buffer of shape (TOTAL_ROWS, HIDDEN).  Every section starts on an
# 8-row (sublane) boundary so in-kernel static slices never straddle tiles.
ROW_W1 = 0                        # (INPUT_SIZE, HIDDEN)        rows [0, 16)
ROW_B1 = 16                       # (1, HIDDEN)                 row  16
ROW_WR = 24                       # DEPTH x (HIDDEN, HIDDEN)    rows 24 + 32*d
ROW_BR = ROW_WR + DEPTH * HIDDEN  # DEPTH x (1, HIDDEN)         rows 120 + 8*d
ROW_WH = ROW_BR + DEPTH * 8       # (HIDDEN, HIDDEN) zero-padded cols >= CLASSES
ROW_BH = ROW_WH + HIDDEN          # (1, HIDDEN)      zero-padded cols >= CLASSES
TOTAL_ROWS = ROW_BH + 8           # 184 rows -> ~23 KB f32


# ------------------------------- kernel -------------------------------------
def residual_mlp_kernel(x_ref, p_ref, out_ref):
    # x_ref:   (BATCH, INPUT_SIZE)
    # p_ref:   (TOTAL_ROWS, HIDDEN)   packed parameters (see layout above)
    # out_ref: (BATCH, CLASSES)
    x = x_ref[...]

    # h = relu(l1(x))
    w1 = p_ref[ROW_W1:ROW_W1 + INPUT_SIZE, :]
    b1 = p_ref[ROW_B1:ROW_B1 + 1, :]
    h = jnp.dot(x, w1, preferred_element_type=jnp.float32) + b1
    h = jnp.maximum(h, 0.0)

    # residual stack: h = relu(layer(h) + h)   (static unroll, depth is tiny)
    for d in range(DEPTH):
        w = p_ref[ROW_WR + d * HIDDEN:ROW_WR + (d + 1) * HIDDEN, :]
        b = p_ref[ROW_BR + d * 8:ROW_BR + d * 8 + 1, :]
        h = jnp.maximum(jnp.dot(h, w, preferred_element_type=jnp.float32) + b + h, 0.0)

    # head: Dropout (identity at inference) -> Linear
    # TODO(synk): training-mode dropout (pltpu.prng_random_bits mask) not implemented.
    wh = p_ref[ROW_WH:ROW_WH + HIDDEN, :]   # cols >= CLASSES are exact zeros
    bh = p_ref[ROW_BH:ROW_BH + 1, :]
    out = jnp.dot(h, wh, preferred_element_type=jnp.float32) + bh
    out_ref[...] = out[:, :CLASSES].astype(out_ref.dtype)


# ------------------------------ wrapper --------------------------------------
def _residual_mlp(x, packed_params):
    vmem = pl.BlockSpec(memory_space=pltpu.MemorySpace.VMEM)
    return pl.pallas_call(
        residual_mlp_kernel,
        out_shape=jax.ShapeDtypeStruct((x.shape[0], CLASSES), x.dtype),
        # No grid: single invocation, both operands fully VMEM-resident,
        # one input DMA each, no pipelining overhead.
        in_specs=[vmem, vmem],
        out_specs=vmem,
    )(x, packed_params)


residual_mlp = jax.jit(_residual_mlp)


# --------------------------- parameter init ----------------------------------
def init_params(key):
    """Deterministic init mimicking PyTorch Linear default (U[-1/sqrt(fan_in), +])."""
    ks = jax.random.split(key, 6)

    def linear(kw, kb, fan_in, fan_out):
        bound = 1.0 / jnp.sqrt(fan_in)
        w = jax.random.uniform(kw, (fan_in, fan_out), jnp.float32, -bound, bound)
        b = jax.random.uniform(kb, (fan_out,), jnp.float32, -bound, bound)
        return w, b

    w1, b1 = linear(ks[0], ks[1], INPUT_SIZE, HIDDEN)

    wr_list, br_list = [], []
    kr = jax.random.split(ks[2], 2 * DEPTH)
    for d in range(DEPTH):
        w, b = linear(kr[2 * d], kr[2 * d + 1], HIDDEN, HIDDEN)
        wr_list.append(w)
        br_list.append(b)
    wr = jnp.stack(wr_list, axis=0)   # (DEPTH, HIDDEN, HIDDEN)
    br = jnp.stack(br_list, axis=0)   # (DEPTH, HIDDEN)

    wh, bh = linear(ks[3], ks[4], HIDDEN, CLASSES)
    return w1, b1, wr, br, wh, bh


def pack_params(params):
    """Done ONCE at init: pad the head and pack everything into one buffer."""
    w1, b1, wr, br, wh, bh = params
    buf = jnp.zeros((TOTAL_ROWS, HIDDEN), jnp.float32)
    buf = buf.at[ROW_W1:ROW_W1 + INPUT_SIZE, :].set(w1)
    buf = buf.at[ROW_B1, :].set(b1)
    for d in range(DEPTH):
        buf = buf.at[ROW_WR + d * HIDDEN:ROW_WR + (d + 1) * HIDDEN, :].set(wr[d])
        buf = buf.at[ROW_BR + d * 8, :].set(br[d])
    buf = buf.at[ROW_WH:ROW_WH + HIDDEN, :CLASSES].set(wh)   # padded cols stay 0
    buf = buf.at[ROW_BH, :CLASSES].set(bh)                   # padded cols stay 0
    return buf


def reference_forward(x, params):
    """Pure-JAX reference with identical semantics (for sanity check)."""
    w1, b1, wr, br, wh, bh = params
    h = jnp.maximum(x @ w1 + b1, 0.0)
    for d in range(DEPTH):
        h = jnp.maximum(h @ wr[d] + br[d] + h, 0.0)
    return h @ wh + bh


# --------------------------------- main ---------------------------------------
if __name__ == "__main__":
    key = jax.random.PRNGKey(0)
    kx, kp = jax.random.split(key)

    x = jax.random.normal(kx, (BATCH, INPUT_SIZE), jnp.float32)
    params = init_params(kp)
    packed = jax.block_until_ready(pack_params(params))   # one-time packing

    out = residual_mlp(x, packed)
    out = jax.block_until_ready(out)

    ref = reference_forward(x, params)
    assert out.shape == (BATCH, CLASSES)
    assert jnp.allclose(out, ref, atol=1e-5, rtol=1e-5)

    print("KERNEL_OK")
</pallas_src>

<mosaic_0001>
module attributes {stable_mosaic.version = 11 : i64} {
  func.func @residual_mlp_kernel(%arg0: memref<16x16xf32, #tpu.memory_space<vmem>>, %arg1: memref<184x32xf32, #tpu.memory_space<vmem>>, %arg2: memref<16x10xf32, #tpu.memory_space<vmem>>) attributes {dimension_semantics = [], scalar_prefetch = 0 : i64, scratch_operands = 0 : i64, tpu.core_type = #tpu.core_type<tc>} {
    %c0 = arith.constant 0 : index
    %c0_0 = arith.constant 0 : index
    %0 = vector.load %arg0[%c0, %c0_0] : memref<16x16xf32, #tpu.memory_space<vmem>>, vector<16x16xf32>
    %c0_1 = arith.constant 0 : index
    %c0_2 = arith.constant 0 : index
    %1 = vector.load %arg1[%c0_1, %c0_2] : memref<184x32xf32, #tpu.memory_space<vmem>>, vector<16x32xf32>
    %c16 = arith.constant 16 : index
    %c0_3 = arith.constant 0 : index
    %2 = vector.load %arg1[%c16, %c0_3] : memref<184x32xf32, #tpu.memory_space<vmem>>, vector<1x32xf32>
    %cst = arith.constant dense<0.000000e+00> : vector<16x32xf32>
    %3 = tpu.matmul %0, %1, %cst {dimension_numbers = #tpu.dot_dimension_numbers<[1], [0], [0], [1], [0, 0, 1, 1], [], []>} : vector<16x16xf32>, vector<16x32xf32>, vector<16x32xf32> -> vector<16x32xf32>
    %4 = vector.broadcast %2 : vector<1x32xf32> to vector<16x32xf32>
    %5 = arith.addf %3, %4 : vector<16x32xf32>
    %cst_4 = arith.constant 0.000000e+00 : f32
    %6 = vector.broadcast %cst_4 : f32 to vector<16x32xf32>
    %7 = arith.maximumf %5, %6 : vector<16x32xf32>
    %c24 = arith.constant 24 : index
    %c0_5 = arith.constant 0 : index
    %8 = vector.load %arg1[%c24, %c0_5] : memref<184x32xf32, #tpu.memory_space<vmem>>, vector<32x32xf32>
    %c120 = arith.constant 120 : index
    %c0_6 = arith.constant 0 : index
    %9 = vector.load %arg1[%c120, %c0_6] : memref<184x32xf32, #tpu.memory_space<vmem>>, vector<1x32xf32>
    %cst_7 = arith.constant dense<0.000000e+00> : vector<16x32xf32>
    %10 = tpu.matmul %7, %8, %cst_7 {dimension_numbers = #tpu.dot_dimension_numbers<[1], [0], [0], [1], [0, 0, 1, 1], [], []>} : vector<16x32xf32>, vector<32x32xf32>, vector<16x32xf32> -> vector<16x32xf32>
    %11 = vector.broadcast %9 : vector<1x32xf32> to vector<16x32xf32>
    %12 = arith.addf %10, %11 : vector<16x32xf32>
    %13 = arith.addf %12, %7 : vector<16x32xf32>
    %cst_8 = arith.constant 0.000000e+00 : f32
    %14 = vector.broadcast %cst_8 : f32 to vector<16x32xf32>
    %15 = arith.maximumf %13, %14 : vector<16x32xf32>
    %c56 = arith.constant 56 : index
    %c0_9 = arith.constant 0 : index
    %16 = vector.load %arg1[%c56, %c0_9] : memref<184x32xf32, #tpu.memory_space<vmem>>, vector<32x32xf32>
    %c128 = arith.constant 128 : index
    %c0_10 = arith.constant 0 : index
    %17 = vector.load %arg1[%c128, %c0_10] : memref<184x32xf32, #tpu.memory_space<vmem>>, vector<1x32xf32>
    %cst_11 = arith.constant dense<0.000000e+00> : vector<16x32xf32>
    %18 = tpu.matmul %15, %16, %cst_11 {dimension_numbers = #tpu.dot_dimension_numbers<[1], [0], [0], [1], [0, 0, 1, 1], [], []>} : vector<16x32xf32>, vector<32x32xf32>, vector<16x32xf32> -> vector<16x32xf32>
    %19 = vector.broadcast %17 : vector<1x32xf32> to vector<16x32xf32>
    %20 = arith.addf %18, %19 : vector<16x32xf32>
    %21 = arith.addf %20, %15 : vector<16x32xf32>
    %cst_12 = arith.constant 0.000000e+00 : f32
    %22 = vector.broadcast %cst_12 : f32 to vector<16x32xf32>
    %23 = arith.maximumf %21, %22 : vector<16x32xf32>
    %c88 = arith.constant 88 : index
    %c0_13 = arith.constant 0 : index
    %24 = vector.load %arg1[%c88, %c0_13] : memref<184x32xf32, #tpu.memory_space<vmem>>, vector<32x32xf32>
    %c136 = arith.constant 136 : index
    %c0_14 = arith.constant 0 : index
    %25 = vector.load %arg1[%c136, %c0_14] : memref<184x32xf32, #tpu.memory_space<vmem>>, vector<1x32xf32>
    %cst_15 = arith.constant dense<0.000000e+00> : vector<16x32xf32>
    %26 = tpu.matmul %23, %24, %cst_15 {dimension_numbers = #tpu.dot_dimension_numbers<[1], [0], [0], [1], [0, 0, 1, 1], [], []>} : vector<16x32xf32>, vector<32x32xf32>, vector<16x32xf32> -> vector<16x32xf32>
    %27 = vector.broadcast %25 : vector<1x32xf32> to vector<16x32xf32>
    %28 = arith.addf %26, %27 : vector<16x32xf32>
    %29 = arith.addf %28, %23 : vector<16x32xf32>
    %cst_16 = arith.constant 0.000000e+00 : f32
    %30 = vector.broadcast %cst_16 : f32 to vector<16x32xf32>
    %31 = arith.maximumf %29, %30 : vector<16x32xf32>
    %c144 = arith.constant 144 : index
    %c0_17 = arith.constant 0 : index
    %32 = vector.load %arg1[%c144, %c0_17] : memref<184x32xf32, #tpu.memory_space<vmem>>, vector<32x32xf32>
    %c176 = arith.constant 176 : index
    %c0_18 = arith.constant 0 : index
    %33 = vector.load %arg1[%c176, %c0_18] : memref<184x32xf32, #tpu.memory_space<vmem>>, vector<1x32xf32>
    %cst_19 = arith.constant dense<0.000000e+00> : vector<16x32xf32>
    %34 = tpu.matmul %31, %32, %cst_19 {dimension_numbers = #tpu.dot_dimension_numbers<[1], [0], [0], [1], [0, 0, 1, 1], [], []>} : vector<16x32xf32>, vector<32x32xf32>, vector<16x32xf32> -> vector<16x32xf32>
    %35 = vector.broadcast %33 : vector<1x32xf32> to vector<16x32xf32>
    %36 = arith.addf %34, %35 : vector<16x32xf32>
    %37 = vector.extract_strided_slice %36 {offsets = [0, 0], sizes = [16, 10], strides = [1, 1]} : vector<16x32xf32> to vector<16x10xf32>
    %c0_20 = arith.constant 0 : index
    %c0_21 = arith.constant 0 : index
    %38 = vector.load %arg2[%c0_20, %c0_21] : memref<16x10xf32, #tpu.memory_space<vmem>>, vector<16x10xf32>
    tpu.vector_store %arg2[%c0_20, %c0_21], %37 {strides = array<i32>} : memref<16x10xf32, #tpu.memory_space<vmem>>, vector<16x10xf32>,
    return
  }
}

</mosaic_0001>

<llo_original>
// kernel: _residual_mlp.1
$region0: #{_residual_mlp.1}
  #allocation0 [shape = 'u32[]', space=smem, size = 0x4, offset = 0x4, fixed_abs, tag = 'smem constant byte address 0x4 - core index']
  #allocation1 [shape = 'u32[72,128]{1,0:T(1,128)}', space=vmem, size = 0x9000, scoped, tag = 'internal scratch']
  %s0 = inlined_call_operand.vmem [shape: f32[16,16], index: 0, kind: input, shape index: {}]
  %s1 = inlined_call_operand.vmem [shape: f32[184,32], index: 1, kind: input, shape index: {}]
  %s2 = inlined_call_operand.hbm [shape: f32[16,10], index: 2, kind: output, shape index: {}]
  %s3 = sld [smem:[#allocation0]]
  $region18: #{_residual_mlp.1} parent=0
    _
  %s5 = ssub.s32 1, %s3
  %s6 = scalar_select 0, %s5, %s3
  $region1: #{_residual_mlp.1} parent=0
    #allocation2 [shape = 'u8[8192]{0}', space=vmem, size = 0x2000, scoped, tag = 'output window, operand 0, single buffered']
    #allocation3 [shape = 's32[1]{0}', space=sflag, size = 0x4, scoped, tag = 'scoped memory for _residual_mlp.1']
    %7 = vsyncpa [#allocation3], 0
    // Predicated region
    $region2: #{_residual_mlp.1} parent=1 // pred_check
      _
    $region3: #{_residual_mlp.1} parent=1 // pred_check_branch
      %9 = sbr.rel (0) target = $region5
    $region4: #{_residual_mlp.1} parent=1 // pred_region
      _
    $region5: #{_residual_mlp.1} parent=1 // pred_fallthru
      _
    // Predicated region
    $region6: #{_residual_mlp.1} parent=1 // pred_check
      _
    $region7: #{_residual_mlp.1} parent=1 // pred_check_branch
      %11 = sbr.rel (0) target = $region9
    $region8: #{_residual_mlp.1} parent=1 // pred_region
      _
    $region9: #{_residual_mlp.1} parent=1 // pred_fallthru
      _
    %v12 = vld [vmem:[%s0] sm:$0xff]
    %v13 = vld [vmem:[%s0 + $0x8] sm:$0xff]
    %v14 = vld [vmem:[%s1] sm:$0xff]
    %v15 = vld [vmem:[%s1 + $0x8] sm:$0xff]
    %v16 = vld [vmem:[%s1 + $0x10] sm:$0x1]
    %v17 = vperm.slane %v16, 0
    %vm18 = vcmask 130048
    %v20 = vsel %vm18, %v12, 0
    %v23 = vsel %vm18, %v13, 0
    %25 = vmatpush.msra.mxu0 0.0
    %26 = vmatpush.msra.mxu0 0.0
    %27 = vmatpush.msra.mxu0 0.0
    %28 = vmatpush.msra.mxu0 0.0
    %29 = vmatpush.msra.mxu0 0.0
    %30 = vmatpush.msra.mxu0 0.0
    %31 = vmatpush.msra.mxu0 0.0
    %32 = vmatpush.msra.mxu0 0.0
    %33 = vmatpush.msra.mxu0 0.0
    %34 = vmatpush.msra.mxu0 0.0
    %35 = vmatpush.msra.mxu0 0.0
    %36 = vmatpush.msra.mxu0 0.0
    %37 = vmatpush.msra.mxu0 0.0
    %38 = vmatpush.msra.mxu0 0.0
    %39 = vmatpush.msra.mxu0 %v15
    %40 = vmatpush.msra.mxu0 %v14
    %41 = vmatmul.f32.gmra.mxu0 %v20
    %v42 = vpop.f32.mrf.mxu0
    %v43 = vadd.f32 %v17, %v42
    %44 = vmatmul.f32.gmra.mxu0 %v23
    %v45 = vpop.f32.mrf.mxu0
    %v46 = vadd.f32 %v17, %v45
    %47 = vdwg.mxu0
    %v48 = vmax.f32 %v43, 0.0
    %v49 = vmax.f32 %v46, 0.0
    %v50 = vld [vmem:[%s1 + $0x18] sm:$0xff]
    %v51 = vld [vmem:[%s1 + $0x20] sm:$0xff]
    %v52 = vld [vmem:[%s1 + $0x28] sm:$0xff]
    %v53 = vld [vmem:[%s1 + $0x30] sm:$0xff]
    %v54 = vld [vmem:[%s1 + $0x78] sm:$0x1]
    %v55 = vperm.slane %v54, 0
    %vm56 = vcmask 261120
    %v58 = vsel %vm56, %v48, 0
    %v61 = vsel %vm56, %v49, 0
    %63 = vmatpush.msra.mxu0 0.0
    %64 = vmatpush.msra.mxu0 0.0
    %65 = vmatpush.msra.mxu0 0.0
    %66 = vmatpush.msra.mxu0 0.0
    %67 = vmatpush.msra.mxu0 0.0
    %68 = vmatpush.msra.mxu0 0.0
    %69 = vmatpush.msra.mxu0 0.0
    %70 = vmatpush.msra.mxu0 0.0
    %71 = vmatpush.msra.mxu0 0.0
    %72 = vmatpush.msra.mxu0 0.0
    %73 = vmatpush.msra.mxu0 0.0
    %74 = vmatpush.msra.mxu0 0.0
    %75 = vmatpush.msra.mxu0 %v53
    %76 = vmatpush.msra.mxu0 %v52
    %77 = vmatpush.msra.mxu0 %v51
    %78 = vmatpush.msra.mxu0 %v50
    %79 = vmatmul.f32.gmra.mxu0 %v58
    %v80 = vpop.f32.mrf.mxu0
    %v81 = vadd.f32 %v55, %v80
    %82 = vmatmul.f32.gmra.mxu0 %v61
    %v83 = vpop.f32.mrf.mxu0
    %v84 = vadd.f32 %v55, %v83
    %85 = vdwg.mxu0
    %v86 = vadd.f32 %v81, %v48
    %v87 = vadd.f32 %v84, %v49
    %v88 = vmax.f32 %v86, 0.0
    %v89 = vmax.f32 %v87, 0.0
    %v90 = vld [vmem:[%s1 + $0x38] sm:$0xff]
    %v91 = vld [vmem:[%s1 + $0x40] sm:$0xff]
    %v92 = vld [vmem:[%s1 + $0x48] sm:$0xff]
    %v93 = vld [vmem:[%s1 + $0x50] sm:$0xff]
    %v94 = vld [vmem:[%s1 + $0x80] sm:$0x1]
    %v95 = vperm.slane %v94, 0
    %v97 = vsel %vm56, %v88, 0
    %v100 = vsel %vm56, %v89, 0
    %102 = vmatpush.msra.mxu0 0.0
    %103 = vmatpush.msra.mxu0 0.0
    %104 = vmatpush.msra.mxu0 0.0
    %105 = vmatpush.msra.mxu0 0.0
    %106 = vmatpush.msra.mxu0 0.0
    %107 = vmatpush.msra.mxu0 0.0
    %108 = vmatpush.msra.mxu0 0.0
    %109 = vmatpush.msra.mxu0 0.0
    %110 = vmatpush.msra.mxu0 0.0
    %111 = vmatpush.msra.mxu0 0.0
    %112 = vmatpush.msra.mxu0 0.0
    %113 = vmatpush.msra.mxu0 0.0
    %114 = vmatpush.msra.mxu0 %v93
    %115 = vmatpush.msra.mxu0 %v92
    %116 = vmatpush.msra.mxu0 %v91
    %117 = vmatpush.msra.mxu0 %v90
    %118 = vmatmul.f32.gmra.mxu0 %v97
    %v119 = vpop.f32.mrf.mxu0
    %v120 = vadd.f32 %v95, %v119
    %121 = vmatmul.f32.gmra.mxu0 %v100
    %v122 = vpop.f32.mrf.mxu0
    %v123 = vadd.f32 %v95, %v122
    %124 = vdwg.mxu0
    %v125 = vadd.f32 %v120, %v88
    %v126 = vadd.f32 %v123, %v89
    %v127 = vmax.f32 %v125, 0.0
    %v128 = vmax.f32 %v126, 0.0
    %v129 = vld [vmem:[%s1 + $0x58] sm:$0xff]
    %v130 = vld [vmem:[%s1 + $0x60] sm:$0xff]
    %v131 = vld [vmem:[%s1 + $0x68] sm:$0xff]
    %v132 = vld [vmem:[%s1 + $0x70] sm:$0xff]
    %v133 = vld [vmem:[%s1 + $0x88] sm:$0x1]
    %v134 = vperm.slane %v133, 0
    %v136 = vsel %vm56, %v127, 0
    %v139 = vsel %vm56, %v128, 0
    %141 = vmatpush.msra.mxu0 0.0
    %142 = vmatpush.msra.mxu0 0.0
    %143 = vmatpush.msra.mxu0 0.0
    %144 = vmatpush.msra.mxu0 0.0
    %145 = vmatpush.msra.mxu0 0.0
    %146 = vmatpush.msra.mxu0 0.0
    %147 = vmatpush.msra.mxu0 0.0
    %148 = vmatpush.msra.mxu0 0.0
    %149 = vmatpush.msra.mxu0 0.0
    %150 = vmatpush.msra.mxu0 0.0
    %151 = vmatpush.msra.mxu0 0.0
    %152 = vmatpush.msra.mxu0 0.0
    %153 = vmatpush.msra.mxu0 %v132
    %154 = vmatpush.msra.mxu0 %v131
    %155 = vmatpush.msra.mxu0 %v130
    %156 = vmatpush.msra.mxu0 %v129
    %157 = vmatmul.f32.gmra.mxu0 %v136
    %v158 = vpop.f32.mrf.mxu0
    %v159 = vadd.f32 %v134, %v158
    %160 = vmatmul.f32.gmra.mxu0 %v139
    %v161 = vpop.f32.mrf.mxu0
    %v162 = vadd.f32 %v134, %v161
    %163 = vdwg.mxu0
    %v164 = vadd.f32 %v159, %v127
    %v165 = vadd.f32 %v162, %v128
    %v166 = vmax.f32 %v164, 0.0
    %v167 = vmax.f32 %v165, 0.0
    %v168 = vld [vmem:[%s1 + $0x90] sm:$0xff]
    %v169 = vld [vmem:[%s1 + $0x98] sm:$0xff]
    %v170 = vld [vmem:[%s1 + $0xa0] sm:$0xff]
    %v171 = vld [vmem:[%s1 + $0xa8] sm:$0xff]
    %v172 = vld [vmem:[%s1 + $0xb0] sm:$0x1]
    %v173 = vperm.slane %v172, 0
    %v175 = vsel %vm56, %v166, 0
    %v178 = vsel %vm56, %v167, 0
    %180 = vmatpush.msra.mxu0 0.0
    %181 = vmatpush.msra.mxu0 0.0
    %182 = vmatpush.msra.mxu0 0.0
    %183 = vmatpush.msra.mxu0 0.0
    %184 = vmatpush.msra.mxu0 0.0
    %185 = vmatpush.msra.mxu0 0.0
    %186 = vmatpush.msra.mxu0 0.0
    %187 = vmatpush.msra.mxu0 0.0
    %188 = vmatpush.msra.mxu0 0.0
    %189 = vmatpush.msra.mxu0 0.0
    %190 = vmatpush.msra.mxu0 0.0
    %191 = vmatpush.msra.mxu0 0.0
    %192 = vmatpush.msra.mxu0 %v171
    %193 = vmatpush.msra.mxu0 %v170
    %194 = vmatpush.msra.mxu0 %v169
    %195 = vmatpush.msra.mxu0 %v168
    %196 = vmatmul.f32.gmra.mxu0 %v175
    %v197 = vpop.f32.mrf.mxu0
    %v198 = vadd.f32 %v173, %v197
    %199 = vmatmul.f32.gmra.mxu0 %v178
    %v200 = vpop.f32.mrf.mxu0
    %v201 = vadd.f32 %v173, %v200
    %202 = vdwg.mxu0
    %vm203 = vcmask 80896
    %204 = vst.msk [vmem:[#allocation2] sm:$0xff] %vm203, %v198
    %205 = vst.msk [vmem:[#allocation2 + $0x8] sm:$0xff] %vm203, %v201
    // Predicated region
    $region10: #{_residual_mlp.1} parent=1 // pred_check
      _
    $region11: #{_residual_mlp.1} parent=1 // pred_check_branch
      %207 = sbr.rel (0) target = $region13
    $region12: #{_residual_mlp.1} parent=1 // pred_region
      %209 = vsyncadd [#allocation3], 0
      %s210 = sshll.u32 [#allocation2], 4
      %s211 = int_to_ptr.vmem [resolvable:$true] %s210
      %s212 = sshll.u32 %s2, 4
      %s213 = int_to_ptr.hbm [resolvable:$true] %s212
      %218 = dma.vmem_to_hbm [thread:$0]  %s211, 256, %s213, [#allocation3], 128, 128, 8
    $region13: #{_residual_mlp.1} parent=1 // pred_fallthru
      _
    // Predicated region
    $region14: #{_residual_mlp.1} parent=1 // pred_check
      _
    $region15: #{_residual_mlp.1} parent=1 // pred_check_branch
      %220 = sbr.rel (0) target = $region17
    $region16: #{_residual_mlp.1} parent=1 // pred_region
      %222 = dma.done [#allocation3], 256
    $region17: #{_residual_mlp.1} parent=1 // pred_fallthru
      _
    %223 = vsyncpa [#allocation3], 1

</llo_original>
